<compile_context>
chip_gen: v5e
topology: v5e:2x2
jax: 0.10.0
libtpu: 0.0.40
codegen_flags: <defaults>
</compile_context>

<pallas_src>
import jax
import jax.numpy as jnp
from jax.experimental import pallas as pl
from jax.experimental.pallas import tpu as pltpu

D_IN = 1024      # fc1 input features
H_PAD = 128      # hidden dims (100 / 64 / 32) zero-padded to one lane-width
OUT_PAD = 128    # n_classes zero-padded to lane width for unmasked output stores


def mlp_kernel(x_ref,
               w1_ref, b1_ref,
               w2_ref, b2_ref,
               w3_ref, b3_ref,
               w4_ref, b4_ref,
               o_ref):
    # fc1 + ReLU : bf16 MXU matmul, f32 accumulate / elementwise
    h = jnp.dot(x_ref[...], w1_ref[...], preferred_element_type=jnp.float32)
    h = jnp.maximum(h + b1_ref[...], 0.0)
    # dropout1 (p=0.1) -> identity in eval mode
    # fc2 + ReLU
    h = jnp.dot(h.astype(jnp.bfloat16), w2_ref[...],
                preferred_element_type=jnp.float32)
    h = jnp.maximum(h + b2_ref[...], 0.0)
    # fc3 + ReLU
    h = jnp.dot(h.astype(jnp.bfloat16), w3_ref[...],
                preferred_element_type=jnp.float32)
    h = jnp.maximum(h + b3_ref[...], 0.0)
    # dropout1 again -> identity in eval mode
    # fc4 + Sigmoid (padded class lanes produce sigmoid(0)=0.5; sliced off in wrapper)
    logits = jnp.dot(h.astype(jnp.bfloat16), w4_ref[...],
                     preferred_element_type=jnp.float32)
    o_ref[...] = jax.nn.sigmoid(logits + b4_ref[...]).astype(o_ref.dtype)


def _pad_to(a, shape):
    pads = [(0, t - s) for s, t in zip(a.shape, shape)]
    return jnp.pad(a, pads)


def protein_classifier_forward(x, params, n_classes=2, tile_b=256):
    """x: (B, 1024) float32. params: dict of (w, b) per layer, w as (in, out) f32."""
    B = x.shape[0]

    # Batch tile: multiple of 8 (sublane), target 256 rows to fill the MXU on v6e/v7x
    # (multiple of 128 on v5e); never larger than the sublane-padded batch.
    b_pad8 = ((B + 7) // 8) * 8
    tb = min(tile_b, b_pad8)
    grid_b = pl.cdiv(b_pad8, tb)
    b_total = grid_b * tb

    # Inputs in bf16 (halves the dominant HBM traffic); biases stay f32.
    x_p = _pad_to(x, (b_total, D_IN)).astype(jnp.bfloat16)
    w1 = _pad_to(params["w1"], (D_IN, H_PAD)).astype(jnp.bfloat16)
    b1 = _pad_to(params["b1"], (1, H_PAD)).astype(jnp.float32)
    w2 = _pad_to(params["w2"], (H_PAD, H_PAD)).astype(jnp.bfloat16)
    b2 = _pad_to(params["b2"], (1, H_PAD)).astype(jnp.float32)
    w3 = _pad_to(params["w3"], (H_PAD, H_PAD)).astype(jnp.bfloat16)
    b3 = _pad_to(params["b3"], (1, H_PAD)).astype(jnp.float32)
    w4 = _pad_to(params["w4"], (H_PAD, OUT_PAD)).astype(jnp.bfloat16)
    b4 = _pad_to(params["b4"], (1, OUT_PAD)).astype(jnp.float32)

    # Weights/biases: same block every grid step -> DMA'd once, resident in VMEM.
    const = lambda shape: pl.BlockSpec(shape, lambda i, s=len(shape): (0,) * s)

    in_specs = [
        pl.BlockSpec((tb, D_IN), lambda i: (i, 0)),   # x: tiled over batch
        const(w1.shape), const(b1.shape),
        const(w2.shape), const(b2.shape),
        const(w3.shape), const(b3.shape),
        const(w4.shape), const(b4.shape),
    ]
    out_specs = pl.BlockSpec((tb, OUT_PAD), lambda i: (i, 0))
    # TODO(synk): if the per-step x DMA is still exposed on very small tiles, bump the
    # x BlockSpec pipeline depth with pipeline_mode=pl.Buffered(3).

    flops = 2 * b_total * (D_IN * H_PAD + 2 * H_PAD * H_PAD + H_PAD * OUT_PAD)
    bytes_accessed = (
        x_p.size * 2
        + (w1.size + w2.size + w3.size + w4.size) * 2
        + (b1.size + b2.size + b3.size + b4.size) * 4
        + b_total * OUT_PAD * 4
    )

    out = pl.pallas_call(
        mlp_kernel,
        out_shape=jax.ShapeDtypeStruct((b_total, OUT_PAD), jnp.float32),
        grid=(grid_b,),
        in_specs=in_specs,
        out_specs=out_specs,
        compiler_params=pltpu.CompilerParams(
            dimension_semantics=("parallel",)),       # batch axis -> both TCs on v7x
        cost_estimate=pl.CostEstimate(
            flops=flops,
            transcendentals=b_total * OUT_PAD,
            bytes_accessed=bytes_accessed),
    )(x_p, w1, b1, w2, b2, w3, b3, w4, b4)

    return out[:B, :n_classes]


def init_params(key, n_classes=2):
    """Deterministic synthetic parameters matching the PyTorch module's shapes.
    Weights stored transposed (in_features, out_features); biases as (1, out). All f32."""
    dims = [(1024, 100), (100, 64), (64, 32), (32, n_classes)]
    params = {}
    keys = jax.random.split(key, 2 * len(dims))
    for i, (fin, fout) in enumerate(dims):
        bound = 1.0 / jnp.sqrt(fin)
        w = jax.random.uniform(keys[2 * i], (fin, fout), jnp.float32, -bound, bound)
        b = jax.random.uniform(keys[2 * i + 1], (1, fout), jnp.float32, -bound, bound)
        params[f"w{i + 1}"] = w
        params[f"b{i + 1}"] = b
    return params


def reference_forward(x, params):
    h = jnp.maximum(x @ params["w1"] + params["b1"], 0.0)
    h = jnp.maximum(h @ params["w2"] + params["b2"], 0.0)
    h = jnp.maximum(h @ params["w3"] + params["b3"], 0.0)
    return jax.nn.sigmoid(h @ params["w4"] + params["b4"])


if __name__ == "__main__":
    key = jax.random.PRNGKey(0)
    k_x, k_p = jax.random.split(key)

    batch = 8
    x = jax.random.normal(k_x, (batch, 1024), jnp.float32)
    params = init_params(k_p, n_classes=2)

    out = protein_classifier_forward(x, params, n_classes=2)
    out = jax.block_until_ready(out)

    ref = reference_forward(x, params)   # full-f32 reference
    assert out.shape == (batch, 2)
    # bf16 matmul operands (f32 accumulation) -> loosen tolerance vs. the f32 reference.
    assert jnp.allclose(out, ref, atol=2e-2, rtol=0.0), "mismatch vs reference"

    print("KERNEL_OK")
</pallas_src>

<mosaic_0001>
module attributes {stable_mosaic.version = 11 : i64} {
  func.func @mlp_kernel(%arg0: i32, %arg1: memref<8x1024xbf16, #tpu.memory_space<vmem>>, %arg2: memref<1024x128xbf16, #tpu.memory_space<vmem>>, %arg3: memref<1x128xf32, #tpu.memory_space<vmem>>, %arg4: memref<128x128xbf16, #tpu.memory_space<vmem>>, %arg5: memref<1x128xf32, #tpu.memory_space<vmem>>, %arg6: memref<128x128xbf16, #tpu.memory_space<vmem>>, %arg7: memref<1x128xf32, #tpu.memory_space<vmem>>, %arg8: memref<128x128xbf16, #tpu.memory_space<vmem>>, %arg9: memref<1x128xf32, #tpu.memory_space<vmem>>, %arg10: memref<8x128xf32, #tpu.memory_space<vmem>>) attributes {dimension_semantics = [#tpu.dimension_semantics<parallel>], iteration_bounds = array<i64: 1>, scalar_prefetch = 0 : i64, scratch_operands = 0 : i64, tpu.core_type = #tpu.core_type<tc>, window_params = [{transform_indices = @transform_0, window_bounds = array<i64: 8, 1024>}, {pipeline_mode = #tpu.pipeline_mode<synchronous>, transform_indices = @transform_1, window_bounds = array<i64: 1024, 128>}, {pipeline_mode = #tpu.pipeline_mode<synchronous>, transform_indices = @transform_2, window_bounds = array<i64: 1, 128>}, {pipeline_mode = #tpu.pipeline_mode<synchronous>, transform_indices = @transform_3, window_bounds = array<i64: 128, 128>}, {pipeline_mode = #tpu.pipeline_mode<synchronous>, transform_indices = @transform_4, window_bounds = array<i64: 1, 128>}, {pipeline_mode = #tpu.pipeline_mode<synchronous>, transform_indices = @transform_5, window_bounds = array<i64: 128, 128>}, {pipeline_mode = #tpu.pipeline_mode<synchronous>, transform_indices = @transform_6, window_bounds = array<i64: 1, 128>}, {pipeline_mode = #tpu.pipeline_mode<synchronous>, transform_indices = @transform_7, window_bounds = array<i64: 128, 128>}, {pipeline_mode = #tpu.pipeline_mode<synchronous>, transform_indices = @transform_8, window_bounds = array<i64: 1, 128>}, {transform_indices = @transform_9, window_bounds = array<i64: 8, 128>}]} {
    %c0 = arith.constant 0 : index
    %c0_0 = arith.constant 0 : index
    %0 = vector.load %arg1[%c0, %c0_0] : memref<8x1024xbf16, #tpu.memory_space<vmem>>, vector<8x1024xbf16>
    %c0_1 = arith.constant 0 : index
    %c0_2 = arith.constant 0 : index
    %1 = vector.load %arg2[%c0_1, %c0_2] : memref<1024x128xbf16, #tpu.memory_space<vmem>>, vector<1024x128xbf16>
    %cst = arith.constant dense<0.000000e+00> : vector<8x128xf32>
    %2 = tpu.matmul %0, %1, %cst {dimension_numbers = #tpu.dot_dimension_numbers<[1], [0], [0], [1], [0, 0, 1, 1], [], []>} : vector<8x1024xbf16>, vector<1024x128xbf16>, vector<8x128xf32> -> vector<8x128xf32>
    %c0_3 = arith.constant 0 : index
    %c0_4 = arith.constant 0 : index
    %3 = vector.load %arg3[%c0_3, %c0_4] : memref<1x128xf32, #tpu.memory_space<vmem>>, vector<1x128xf32>
    %4 = vector.broadcast %3 : vector<1x128xf32> to vector<8x128xf32>
    %5 = arith.addf %2, %4 : vector<8x128xf32>
    %cst_5 = arith.constant 0.000000e+00 : f32
    %6 = vector.broadcast %cst_5 : f32 to vector<8x128xf32>
    %7 = arith.maximumf %5, %6 : vector<8x128xf32>
    %8 = arith.truncf %7 : vector<8x128xf32> to vector<8x128xbf16>
    %c0_6 = arith.constant 0 : index
    %c0_7 = arith.constant 0 : index
    %9 = vector.load %arg4[%c0_6, %c0_7] : memref<128x128xbf16, #tpu.memory_space<vmem>>, vector<128x128xbf16>
    %cst_8 = arith.constant dense<0.000000e+00> : vector<8x128xf32>
    %10 = tpu.matmul %8, %9, %cst_8 {dimension_numbers = #tpu.dot_dimension_numbers<[1], [0], [0], [1], [0, 0, 1, 1], [], []>} : vector<8x128xbf16>, vector<128x128xbf16>, vector<8x128xf32> -> vector<8x128xf32>
    %c0_9 = arith.constant 0 : index
    %c0_10 = arith.constant 0 : index
    %11 = vector.load %arg5[%c0_9, %c0_10] : memref<1x128xf32, #tpu.memory_space<vmem>>, vector<1x128xf32>
    %12 = vector.broadcast %11 : vector<1x128xf32> to vector<8x128xf32>
    %13 = arith.addf %10, %12 : vector<8x128xf32>
    %cst_11 = arith.constant 0.000000e+00 : f32
    %14 = vector.broadcast %cst_11 : f32 to vector<8x128xf32>
    %15 = arith.maximumf %13, %14 : vector<8x128xf32>
    %16 = arith.truncf %15 : vector<8x128xf32> to vector<8x128xbf16>
    %c0_12 = arith.constant 0 : index
    %c0_13 = arith.constant 0 : index
    %17 = vector.load %arg6[%c0_12, %c0_13] : memref<128x128xbf16, #tpu.memory_space<vmem>>, vector<128x128xbf16>
    %cst_14 = arith.constant dense<0.000000e+00> : vector<8x128xf32>
    %18 = tpu.matmul %16, %17, %cst_14 {dimension_numbers = #tpu.dot_dimension_numbers<[1], [0], [0], [1], [0, 0, 1, 1], [], []>} : vector<8x128xbf16>, vector<128x128xbf16>, vector<8x128xf32> -> vector<8x128xf32>
    %c0_15 = arith.constant 0 : index
    %c0_16 = arith.constant 0 : index
    %19 = vector.load %arg7[%c0_15, %c0_16] : memref<1x128xf32, #tpu.memory_space<vmem>>, vector<1x128xf32>
    %20 = vector.broadcast %19 : vector<1x128xf32> to vector<8x128xf32>
    %21 = arith.addf %18, %20 : vector<8x128xf32>
    %cst_17 = arith.constant 0.000000e+00 : f32
    %22 = vector.broadcast %cst_17 : f32 to vector<8x128xf32>
    %23 = arith.maximumf %21, %22 : vector<8x128xf32>
    %24 = arith.truncf %23 : vector<8x128xf32> to vector<8x128xbf16>
    %c0_18 = arith.constant 0 : index
    %c0_19 = arith.constant 0 : index
    %25 = vector.load %arg8[%c0_18, %c0_19] : memref<128x128xbf16, #tpu.memory_space<vmem>>, vector<128x128xbf16>
    %cst_20 = arith.constant dense<0.000000e+00> : vector<8x128xf32>
    %26 = tpu.matmul %24, %25, %cst_20 {dimension_numbers = #tpu.dot_dimension_numbers<[1], [0], [0], [1], [0, 0, 1, 1], [], []>} : vector<8x128xbf16>, vector<128x128xbf16>, vector<8x128xf32> -> vector<8x128xf32>
    %c0_21 = arith.constant 0 : index
    %c0_22 = arith.constant 0 : index
    %27 = vector.load %arg9[%c0_21, %c0_22] : memref<1x128xf32, #tpu.memory_space<vmem>>, vector<1x128xf32>
    %28 = vector.broadcast %27 : vector<1x128xf32> to vector<8x128xf32>
    %29 = arith.addf %26, %28 : vector<8x128xf32>
    %30 = arith.negf %29 : vector<8x128xf32>
    %31 = math.exp %30 : vector<8x128xf32>
    %cst_23 = arith.constant 1.000000e+00 : f32
    %32 = vector.broadcast %cst_23 : f32 to vector<8x128xf32>
    %33 = arith.addf %32, %31 : vector<8x128xf32>
    %34 = arith.divf %32, %33 : vector<8x128xf32>
    %c0_24 = arith.constant 0 : index
    %c0_25 = arith.constant 0 : index
    %35 = vector.load %arg10[%c0_24, %c0_25] : memref<8x128xf32, #tpu.memory_space<vmem>>, vector<8x128xf32>
    tpu.vector_store %arg10[%c0_24, %c0_25], %34 {strides = array<i32>} : memref<8x128xf32, #tpu.memory_space<vmem>>, vector<8x128xf32>,
    return
  }
  func.func @transform_0(%arg0: i32) -> (i32, i32) {
    %c0_i32 = arith.constant 0 : i32
    %c0_i32_0 = arith.constant 0 : i32
    return %arg0, %c0_i32 : i32, i32
  }
  func.func @transform_1(%arg0: i32) -> (i32, i32) {
    %c0_i32 = arith.constant 0 : i32
    %c0_i32_0 = arith.constant 0 : i32
    %c0_i32_1 = arith.constant 0 : i32
    return %c0_i32, %c0_i32_0 : i32, i32
  }
  func.func @transform_2(%arg0: i32) -> (i32, i32) {
    %c0_i32 = arith.constant 0 : i32
    %c0_i32_0 = arith.constant 0 : i32
    %c0_i32_1 = arith.constant 0 : i32
    return %c0_i32, %c0_i32_0 : i32, i32
  }
  func.func @transform_3(%arg0: i32) -> (i32, i32) {
    %c0_i32 = arith.constant 0 : i32
    %c0_i32_0 = arith.constant 0 : i32
    %c0_i32_1 = arith.constant 0 : i32
    return %c0_i32, %c0_i32_0 : i32, i32
  }
  func.func @transform_4(%arg0: i32) -> (i32, i32) {
    %c0_i32 = arith.constant 0 : i32
    %c0_i32_0 = arith.constant 0 : i32
    %c0_i32_1 = arith.constant 0 : i32
    return %c0_i32, %c0_i32_0 : i32, i32
  }
  func.func @transform_5(%arg0: i32) -> (i32, i32) {
    %c0_i32 = arith.constant 0 : i32
    %c0_i32_0 = arith.constant 0 : i32
    %c0_i32_1 = arith.constant 0 : i32
    return %c0_i32, %c0_i32_0 : i32, i32
  }
  func.func @transform_6(%arg0: i32) -> (i32, i32) {
    %c0_i32 = arith.constant 0 : i32
    %c0_i32_0 = arith.constant 0 : i32
    %c0_i32_1 = arith.constant 0 : i32
    return %c0_i32, %c0_i32_0 : i32, i32
  }
  func.func @transform_7(%arg0: i32) -> (i32, i32) {
    %c0_i32 = arith.constant 0 : i32
    %c0_i32_0 = arith.constant 0 : i32
    %c0_i32_1 = arith.constant 0 : i32
    return %c0_i32, %c0_i32_0 : i32, i32
  }
  func.func @transform_8(%arg0: i32) -> (i32, i32) {
    %c0_i32 = arith.constant 0 : i32
    %c0_i32_0 = arith.constant 0 : i32
    %c0_i32_1 = arith.constant 0 : i32
    return %c0_i32, %c0_i32_0 : i32, i32
  }
  func.func @transform_9(%arg0: i32) -> (i32, i32) {
    %c0_i32 = arith.constant 0 : i32
    %c0_i32_0 = arith.constant 0 : i32
    return %arg0, %c0_i32 : i32, i32
  }
}

</mosaic_0001>

<llo_original>
// kernel: tpu_custom_call.1
$region0: #{tpu_custom_call.1}
  #allocation0 [shape = 'u32[]', space=smem, size = 0x4, offset = 0x4, fixed_abs, tag = 'smem constant byte address 0x4 - core index']
  #allocation1 [shape = 'u32[72,128]{1,0:T(1,128)}', space=vmem, size = 0x9000, scoped, tag = 'internal scratch']
  %s0 = inlined_call_operand.hbm [shape: bf16[8,1024], index: 0, kind: input, shape index: {}]
  %s1 = inlined_call_operand.hbm [shape: bf16[1024,128], index: 1, kind: input, shape index: {}]
  %s2 = inlined_call_operand.vmem [shape: f32[1,128], index: 2, kind: input, shape index: {}]
  %s3 = inlined_call_operand.hbm [shape: bf16[128,128], index: 3, kind: input, shape index: {}]
  %s4 = inlined_call_operand.vmem [shape: f32[1,128], index: 4, kind: input, shape index: {}]
  %s5 = inlined_call_operand.hbm [shape: bf16[128,128], index: 5, kind: input, shape index: {}]
  %s6 = inlined_call_operand.vmem [shape: f32[1,128], index: 6, kind: input, shape index: {}]
  %s7 = inlined_call_operand.hbm [shape: bf16[128,128], index: 7, kind: input, shape index: {}]
  %s8 = inlined_call_operand.vmem [shape: f32[1,128], index: 8, kind: input, shape index: {}]
  %s9 = inlined_call_operand.hbm [shape: f32[8,128], index: 9, kind: output, shape index: {}]
  %s10 = sld [smem:[#allocation0]]
  $region66: #{tpu_custom_call.1} parent=0
    _
  %s12 = ssub.s32 1, %s10
  %s13 = scalar_select 0, %s12, %s10
  $region1: #{tpu_custom_call.1} parent=0
    #allocation2 [shape = 'u8[16384]{0}', space=vmem, size = 0x4000, scoped, tag = 'input window, operand 0, single buffered']
    #allocation3 [shape = 's32[1]{0}', space=sflag, size = 0x4, scoped, tag = 'scoped memory for tpu_custom_call.1']
    #allocation4 [shape = 's32[1]{0}', space=sflag, size = 0x4, scoped, tag = 'scoped memory for tpu_custom_call.1']
    #allocation5 [shape = 'u8[262144]{0}', space=vmem, size = 0x40000, scoped, tag = 'input window, operand 1, single buffered']
    #allocation6 [shape = 's32[1]{0}', space=sflag, size = 0x4, scoped, tag = 'scoped memory for tpu_custom_call.1']
    #allocation7 [shape = 'u8[32768]{0}', space=vmem, size = 0x8000, scoped, tag = 'input window, operand 3, single buffered']
    #allocation8 [shape = 'u8[32768]{0}', space=vmem, size = 0x8000, scoped, tag = 'input window, operand 5, single buffered']
    #allocation9 [shape = 's32[1]{0}', space=sflag, size = 0x4, scoped, tag = 'scoped memory for tpu_custom_call.1']
    #allocation10 [shape = 'u8[32768]{0}', space=vmem, size = 0x8000, scoped, tag = 'input window, operand 7, single buffered']
    #allocation11 [shape = 'u8[4096]{0}', space=vmem, size = 0x1000, scoped, tag = 'output window, operand 0, single buffered']
    %14 = vsyncpa [#allocation3], 0
    %15 = vsyncpa [#allocation6], 0
    %16 = vsyncpa [#allocation9], 0
    %17 = vsyncpa [#allocation4], 0
    // Predicated region
    $region2: #{tpu_custom_call.1} parent=1 // pred_check
      _
    $region3: #{tpu_custom_call.1} parent=1 // pred_check_branch
      %19 = sbr.rel (0) target = $region5
    $region4: #{tpu_custom_call.1} parent=1 // pred_region
      %21 = vsyncadd [#allocation3], 0
      %s23 = sshll.u32 %s0, 4
      %s24 = int_to_ptr.hbm [resolvable:$true] %s23
      %s25 = sshll.u32 [#allocation2], 4
      %s26 = int_to_ptr.vmem [resolvable:$true] %s25
      %28 = dma.hbm_to_vmem [thread:$0]  %s24, 512, %s26, [#allocation3]
    $region5: #{tpu_custom_call.1} parent=1 // pred_fallthru
      _
    // Predicated region
    $region6: #{tpu_custom_call.1} parent=1 // pred_check
      _
    $region7: #{tpu_custom_call.1} parent=1 // pred_check_branch
      %30 = sbr.rel (0) target = $region9
    $region8: #{tpu_custom_call.1} parent=1 // pred_region
      %32 = vsyncadd [#allocation6], 0
      %s33 = sshll.u32 %s1, 4
      %s34 = int_to_ptr.hbm [resolvable:$true] %s33
      %s35 = sshll.u32 [#allocation5], 4
      %s36 = int_to_ptr.vmem [resolvable:$true] %s35
      %41 = dma.hbm_to_vmem [thread:$0]  %s34, 8192, %s36, [#allocation6], 64, 64, 4
    $region9: #{tpu_custom_call.1} parent=1 // pred_fallthru
      _
    // Predicated region
    $region10: #{tpu_custom_call.1} parent=1 // pred_check
      _
    $region11: #{tpu_custom_call.1} parent=1 // pred_check_branch
      %43 = sbr.rel (0) target = $region13
    $region12: #{tpu_custom_call.1} parent=1 // pred_region
      _
    $region13: #{tpu_custom_call.1} parent=1 // pred_fallthru
      _
    // Predicated region
    $region14: #{tpu_custom_call.1} parent=1 // pred_check
      _
    $region15: #{tpu_custom_call.1} parent=1 // pred_check_branch
      %45 = sbr.rel (0) target = $region17
    $region16: #{tpu_custom_call.1} parent=1 // pred_region
      %47 = vsyncadd [#allocation6], 0
      %s48 = sshll.u32 %s3, 4
      %s49 = int_to_ptr.hbm [resolvable:$true] %s48
      %s50 = sshll.u32 [#allocation7], 4
      %s51 = int_to_ptr.vmem [resolvable:$true] %s50
      %56 = dma.hbm_to_vmem [thread:$0]  %s49, 1024, %s51, [#allocation6], 64, 64, 4
    $region17: #{tpu_custom_call.1} parent=1 // pred_fallthru
      _
    // Predicated region
    $region18: #{tpu_custom_call.1} parent=1 // pred_check
      _
    $region19: #{tpu_custom_call.1} parent=1 // pred_check_branch
      %58 = sbr.rel (0) target = $region21
    $region20: #{tpu_custom_call.1} parent=1 // pred_region
      _
    $region21: #{tpu_custom_call.1} parent=1 // pred_fallthru
      _
    // Predicated region
    $region22: #{tpu_custom_call.1} parent=1 // pred_check
      _
    $region23: #{tpu_custom_call.1} parent=1 // pred_check_branch
      %60 = sbr.rel (0) target = $region25
    $region24: #{tpu_custom_call.1} parent=1 // pred_region
      %62 = vsyncadd [#allocation9], 0
      %s63 = sshll.u32 %s5, 4
      %s64 = int_to_ptr.hbm [resolvable:$true] %s63
      %s65 = sshll.u32 [#allocation8], 4
      %s66 = int_to_ptr.vmem [resolvable:$true] %s65
      %71 = dma.hbm_to_vmem [thread:$0]  %s64, 1024, %s66, [#allocation9], 64, 64, 4
    $region25: #{tpu_custom_call.1} parent=1 // pred_fallthru
      _
    // Predicated region
    $region26: #{tpu_custom_call.1} parent=1 // pred_check
      _
    $region27: #{tpu_custom_call.1} parent=1 // pred_check_branch
      %73 = sbr.rel (0) target = $region29
    $region28: #{tpu_custom_call.1} parent=1 // pred_region
      _
    $region29: #{tpu_custom_call.1} parent=1 // pred_fallthru
      _
    // Predicated region
    $region30: #{tpu_custom_call.1} parent=1 // pred_check
      _
    $region31: #{tpu_custom_call.1} parent=1 // pred_check_branch
      %75 = sbr.rel (0) target = $region33
    $region32: #{tpu_custom_call.1} parent=1 // pred_region
      %77 = vsyncadd [#allocation9], 0
      %s78 = sshll.u32 %s7, 4
      %s79 = int_to_ptr.hbm [resolvable:$true] %s78
      %s80 = sshll.u32 [#allocation10], 4
      %s81 = int_to_ptr.vmem [resolvable:$true] %s80
      %86 = dma.hbm_to_vmem [thread:$0]  %s79, 1024, %s81, [#allocation9], 64, 64, 4
    $region33: #{tpu_custom_call.1} parent=1 // pred_fallthru
      _
    // Predicated region
    $region34: #{tpu_custom_call.1} parent=1 // pred_check
      _
    $region35: #{tpu_custom_call.1} parent=1 // pred_check_branch
      %88 = sbr.rel (0) target = $region37
    $region36: #{tpu_custom_call.1} parent=1 // pred_region
      _
    $region37: #{tpu_custom_call.1} parent=1 // pred_fallthru
      _
    // Predicated region
    $region38: #{tpu_custom_call.1} parent=1 // pred_check
      _
    $region39: #{tpu_custom_call.1} parent=1 // pred_check_branch
      %90 = sbr.rel (0) target = $region41
    $region40: #{tpu_custom_call.1} parent=1 // pred_region
      %92 = dma.done [#allocation3], 512
    $region41: #{tpu_custom_call.1} parent=1 // pred_fallthru
      _
    // Predicated region
    $region42: #{tpu_custom_call.1} parent=1 // pred_check
      _
    $region43: #{tpu_custom_call.1} parent=1 // pred_check_branch
      %94 = sbr.rel (0) target = $region45
    $region44: #{tpu_custom_call.1} parent=1 // pred_region
      %96 = dma.done [#allocation6], 8192
    $region45: #{tpu_custom_call.1} parent=1 // pred_fallthru
      _
    // Predicated region
    $region46: #{tpu_custom_call.1} parent=1 // pred_check
      _
    $region47: #{tpu_custom_call.1} parent=1 // pred_check_branch
      %98 = sbr.rel (0) target = $region49
    $region48: #{tpu_custom_call.1} parent=1 // pred_region
      %100 = dma.done [#allocation6], 1024
    $region49: #{tpu_custom_call.1} parent=1 // pred_fallthru
      _
    // Predicated region
    $region50: #{tpu_custom_call.1} parent=1 // pred_check
      _
    $region51: #{tpu_custom_call.1} parent=1 // pred_check_branch
      %102 = sbr.rel (0) target = $region53
    $region52: #{tpu_custom_call.1} parent=1 // pred_region
      %104 = dma.done [#allocation9], 1024
    $region53: #{tpu_custom_call.1} parent=1 // pred_fallthru
      _
    // Predicated region
    $region54: #{tpu_custom_call.1} parent=1 // pred_check
      _
    $region55: #{tpu_custom_call.1} parent=1 // pred_check_branch
      %106 = sbr.rel (0) target = $region57
    $region56: #{tpu_custom_call.1} parent=1 // pred_region
      %108 = dma.done [#allocation9], 1024
    $region57: #{tpu_custom_call.1} parent=1 // pred_fallthru
      _
    %v109 = vld [vmem:[#allocation2] sm:$0xff]
    %v110 = vld [vmem:[#allocation2 + $0x8] sm:$0xff]
    %v111 = vld [vmem:[#allocation2 + $0x10] sm:$0xff]
    %v112 = vld [vmem:[#allocation2 + $0x18] sm:$0xff]
    %v113 = vld [vmem:[#allocation5] sm:$0xf]
    %v114 = vld [vmem:[#allocation5 + $0x4] sm:$0xf]
    %v115 = vld [vmem:[#allocation5 + $0x8] sm:$0xf]
    %v116 = vld [vmem:[#allocation5 + $0xc] sm:$0xf]
    %v117 = vld [vmem:[#allocation5 + $0x10] sm:$0xf]
    %v118 = vld [vmem:[#allocation5 + $0x14] sm:$0xf]
    %v119 = vld [vmem:[#allocation5 + $0x18] sm:$0xf]
    %v120 = vld [vmem:[#allocation5 + $0x1c] sm:$0xf]
    %v121 = vld [vmem:[#allocation5 + $0x20] sm:$0xf]
    %v122 = vld [vmem:[#allocation5 + $0x24] sm:$0xf]
    %v123 = vld [vmem:[#allocation5 + $0x28] sm:$0xf]
    %v124 = vld [vmem:[#allocation5 + $0x2c] sm:$0xf]
    %v125 = vld [vmem:[#allocation5 + $0x30] sm:$0xf]
    %v126 = vld [vmem:[#allocation5 + $0x34] sm:$0xf]
    %v127 = vld [vmem:[#allocation5 + $0x38] sm:$0xf]
    %v128 = vld [vmem:[#allocation5 + $0x3c] sm:$0xf]
    %v129 = vld [vmem:[#allocation5 + $0x40] sm:$0xf]
    %v130 = vld [vmem:[#allocation5 + $0x44] sm:$0xf]
    %v131 = vld [vmem:[#allocation5 + $0x48] sm:$0xf]
    %v132 = vld [vmem:[#allocation5 + $0x4c] sm:$0xf]
    %v133 = vld [vmem:[#allocation5 + $0x50] sm:$0xf]
    %v134 = vld [vmem:[#allocation5 + $0x54] sm:$0xf]
    %v135 = vld [vmem:[#allocation5 + $0x58] sm:$0xf]
    %v136 = vld [vmem:[#allocation5 + $0x5c] sm:$0xf]
    %v137 = vld [vmem:[#allocation5 + $0x60] sm:$0xf]
    %v138 = vld [vmem:[#allocation5 + $0x64] sm:$0xf]
    %v139 = vld [vmem:[#allocation5 + $0x68] sm:$0xf]
    %v140 = vld [vmem:[#allocation5 + $0x6c] sm:$0xf]
    %v141 = vld [vmem:[#allocation5 + $0x70] sm:$0xf]
    %v142 = vld [vmem:[#allocation5 + $0x74] sm:$0xf]
    %v143 = vld [vmem:[#allocation5 + $0x78] sm:$0xf]
    %v144 = vld [vmem:[#allocation5 + $0x7c] sm:$0xf]
    %v145 = vld [vmem:[#allocation5 + $0x80] sm:$0xf]
    %v146 = vld [vmem:[#allocation5 + $0x84] sm:$0xf]
    %v147 = vld [vmem:[#allocation5 + $0x88] sm:$0xf]
    %v148 = vld [vmem:[#allocation5 + $0x8c] sm:$0xf]
    %v149 = vld [vmem:[#allocation5 + $0x90] sm:$0xf]
    %v150 = vld [vmem:[#allocation5 + $0x94] sm:$0xf]
    %v151 = vld [vmem:[#allocation5 + $0x98] sm:$0xf]
    %v152 = vld [vmem:[#allocation5 + $0x9c] sm:$0xf]
    %v153 = vld [vmem:[#allocation5 + $0xa0] sm:$0xf]
    %v154 = vld [vmem:[#allocation5 + $0xa4] sm:$0xf]
    %v155 = vld [vmem:[#allocation5 + $0xa8] sm:$0xf]
    %v156 = vld [vmem:[#allocation5 + $0xac] sm:$0xf]
    %v157 = vld [vmem:[#allocation5 + $0xb0] sm:$0xf]
    %v158 = vld [vmem:[#allocation5 + $0xb4] sm:$0xf]
    %v159 = vld [vmem:[#allocation5 + $0xb8] sm:$0xf]
    %v160 = vld [vmem:[#allocation5 + $0xbc] sm:$0xf]
    %v161 = vld [vmem:[#allocation5 + $0xc0] sm:$0xf]
    %v162 = vld [vmem:[#allocation5 + $0xc4] sm:$0xf]
    %v163 = vld [vmem:[#allocation5 + $0xc8] sm:$0xf]
    %v164 = vld [vmem:[#allocation5 + $0xcc] sm:$0xf]
    %v165 = vld [vmem:[#allocation5 + $0xd0] sm:$0xf]
    %v166 = vld [vmem:[#allocation5 + $0xd4] sm:$0xf]
    %v167 = vld [vmem:[#allocation5 + $0xd8] sm:$0xf]
    %v168 = vld [vmem:[#allocation5 + $0xdc] sm:$0xf]
    %v169 = vld [vmem:[#allocation5 + $0xe0] sm:$0xf]
    %v170 = vld [vmem:[#allocation5 + $0xe4] sm:$0xf]
    %v171 = vld [vmem:[#allocation5 + $0xe8] sm:$0xf]
    %v172 = vld [vmem:[#allocation5 + $0xec] sm:$0xf]
    %v173 = vld [vmem:[#allocation5 + $0xf0] sm:$0xf]
    %v174 = vld [vmem:[#allocation5 + $0xf4] sm:$0xf]
    %v175 = vld [vmem:[#allocation5 + $0xf8] sm:$0xf]
    %v176 = vld [vmem:[#allocation5 + $0xfc] sm:$0xf]
    %v177 = vld [vmem:[#allocation5 + $0x100] sm:$0xf]
    %v178 = vld [vmem:[#allocation5 + $0x104] sm:$0xf]
    %v179 = vld [vmem:[#allocation5 + $0x108] sm:$0xf]
    %v180 = vld [vmem:[#allocation5 + $0x10c] sm:$0xf]
    %v181 = vld [vmem:[#allocation5 + $0x110] sm:$0xf]
    %v182 = vld [vmem:[#allocation5 + $0x114] sm:$0xf]
    %v183 = vld [vmem:[#allocation5 + $0x118] sm:$0xf]
    %v184 = vld [vmem:[#allocation5 + $0x11c] sm:$0xf]
    %v185 = vld [vmem:[#allocation5 + $0x120] sm:$0xf]
    %v186 = vld [vmem:[#allocation5 + $0x124] sm:$0xf]
    %v187 = vld [vmem:[#allocation5 + $0x128] sm:$0xf]
    %v188 = vld [vmem:[#allocation5 + $0x12c] sm:$0xf]
    %v189 = vld [vmem:[#allocation5 + $0x130] sm:$0xf]
    %v190 = vld [vmem:[#allocation5 + $0x134] sm:$0xf]
    %v191 = vld [vmem:[#allocation5 + $0x138] sm:$0xf]
    %v192 = vld [vmem:[#allocation5 + $0x13c] sm:$0xf]
    %v193 = vld [vmem:[#allocation5 + $0x140] sm:$0xf]
    %v194 = vld [vmem:[#allocation5 + $0x144] sm:$0xf]
    %v195 = vld [vmem:[#allocation5 + $0x148] sm:$0xf]
    %v196 = vld [vmem:[#allocation5 + $0x14c] sm:$0xf]
    %v197 = vld [vmem:[#allocation5 + $0x150] sm:$0xf]
    %v198 = vld [vmem:[#allocation5 + $0x154] sm:$0xf]
    %v199 = vld [vmem:[#allocation5 + $0x158] sm:$0xf]
    %v200 = vld [vmem:[#allocation5 + $0x15c] sm:$0xf]
    %v201 = vld [vmem:[#allocation5 + $0x160] sm:$0xf]
    %v202 = vld [vmem:[#allocation5 + $0x164] sm:$0xf]
    %v203 = vld [vmem:[#allocation5 + $0x168] sm:$0xf]
    %v204 = vld [vmem:[#allocation5 + $0x16c] sm:$0xf]
    %v205 = vld [vmem:[#allocation5 + $0x170] sm:$0xf]
    %v206 = vld [vmem:[#allocation5 + $0x174] sm:$0xf]
    %v207 = vld [vmem:[#allocation5 + $0x178] sm:$0xf]
    %v208 = vld [vmem:[#allocation5 + $0x17c] sm:$0xf]
    %v209 = vld [vmem:[#allocation5 + $0x180] sm:$0xf]
    %v210 = vld [vmem:[#allocation5 + $0x184] sm:$0xf]
    %v211 = vld [vmem:[#allocation5 + $0x188] sm:$0xf]
    %v212 = vld [vmem:[#allocation5 + $0x18c] sm:$0xf]
    %v213 = vld [vmem:[#allocation5 + $0x190] sm:$0xf]
    %v214 = vld [vmem:[#allocation5 + $0x194] sm:$0xf]
    %v215 = vld [vmem:[#allocation5 + $0x198] sm:$0xf]
    %v216 = vld [vmem:[#allocation5 + $0x19c] sm:$0xf]
    %v217 = vld [vmem:[#allocation5 + $0x1a0] sm:$0xf]
    %v218 = vld [vmem:[#allocation5 + $0x1a4] sm:$0xf]
    %v219 = vld [vmem:[#allocation5 + $0x1a8] sm:$0xf]
    %v220 = vld [vmem:[#allocation5 + $0x1ac] sm:$0xf]
    %v221 = vld [vmem:[#allocation5 + $0x1b0] sm:$0xf]
    %v222 = vld [vmem:[#allocation5 + $0x1b4] sm:$0xf]
    %v223 = vld [vmem:[#allocation5 + $0x1b8] sm:$0xf]
    %v224 = vld [vmem:[#allocation5 + $0x1bc] sm:$0xf]
    %v225 = vld [vmem:[#allocation5 + $0x1c0] sm:$0xf]
    %v226 = vld [vmem:[#allocation5 + $0x1c4] sm:$0xf]
    %v227 = vld [vmem:[#allocation5 + $0x1c8] sm:$0xf]
    %v228 = vld [vmem:[#allocation5 + $0x1cc] sm:$0xf]
    %v229 = vld [vmem:[#allocation5 + $0x1d0] sm:$0xf]
    %v230 = vld [vmem:[#allocation5 + $0x1d4] sm:$0xf]
    %v231 = vld [vmem:[#allocation5 + $0x1d8] sm:$0xf]
    %v232 = vld [vmem:[#allocation5 + $0x1dc] sm:$0xf]
    %v233 = vld [vmem:[#allocation5 + $0x1e0] sm:$0xf]
    %v234 = vld [vmem:[#allocation5 + $0x1e4] sm:$0xf]
    %v235 = vld [vmem:[#allocation5 + $0x1e8] sm:$0xf]
    %v236 = vld [vmem:[#allocation5 + $0x1ec] sm:$0xf]
    %v237 = vld [vmem:[#allocation5 + $0x1f0] sm:$0xf]
    %v238 = vld [vmem:[#allocation5 + $0x1f4] sm:$0xf]
    %v239 = vld [vmem:[#allocation5 + $0x1f8] sm:$0xf]
    %v240 = vld [vmem:[#allocation5 + $0x1fc] sm:$0xf]
    %v241 = vld [vmem:[%s2] sm:$0x1]
    %v243 = vperm.slane %v241, 0
    %v249 = vunpack.c.l.b16 %v109
    %v250 = vunpack.c.h.b16 %v109
    %v251 = vunpack.c.l.b16 %v110
    %v252 = vunpack.c.h.b16 %v110
    %v253 = vunpack.c.l.b16 %v111
    %v254 = vunpack.c.h.b16 %v111
    %v255 = vunpack.c.l.b16 %v112
    %v256 = vunpack.c.h.b16 %v112
    %v257 = vpack.c.b16 %v249, %v249
    %v258 = vpack.c.b16 %v250, %v250
    %v259 = vpack.c.b16 %v251, %v251
    %v260 = vpack.c.b16 %v252, %v252
    %v261 = vpack.c.b16 %v253, %v253
    %v262 = vpack.c.b16 %v254, %v254
    %v263 = vpack.c.b16 %v255, %v255
    %v264 = vpack.c.b16 %v256, %v256
    %v401 = vunpack.c.l.b16 %v113
    %v402 = vunpack.c.l.b16 %v114
    %v403 = vunpack.c.l.b16 %v115
    %v404 = vunpack.c.l.b16 %v116
    %v405 = vunpack.c.l.b16 %v117
    %v406 = vunpack.c.l.b16 %v118
    %v407 = vunpack.c.l.b16 %v119
    %v408 = vunpack.c.l.b16 %v120
    %v409 = vunpack.c.l.b16 %v121
    %v410 = vunpack.c.l.b16 %v122
    %v411 = vunpack.c.l.b16 %v123
    %v412 = vunpack.c.l.b16 %v124
    %v413 = vunpack.c.l.b16 %v125
    %v414 = vunpack.c.l.b16 %v126
    %v415 = vunpack.c.l.b16 %v127
    %v416 = vunpack.c.l.b16 %v128
    %v417 = vunpack.c.l.b16 %v129
    %v418 = vunpack.c.l.b16 %v130
    %v419 = vunpack.c.l.b16 %v131
    %v420 = vunpack.c.l.b16 %v132
    %v421 = vunpack.c.l.b16 %v133
    %v422 = vunpack.c.l.b16 %v134
    %v423 = vunpack.c.l.b16 %v135
    %v424 = vunpack.c.l.b16 %v136
    %v425 = vunpack.c.l.b16 %v137
    %v426 = vunpack.c.l.b16 %v138
    %v427 = vunpack.c.l.b16 %v139
    %v428 = vunpack.c.l.b16 %v140
    %v429 = vunpack.c.l.b16 %v141
    %v430 = vunpack.c.l.b16 %v142
    %v431 = vunpack.c.l.b16 %v143
    %v432 = vunpack.c.l.b16 %v144
    %v433 = vunpack.c.l.b16 %v145
    %v434 = vunpack.c.l.b16 %v146
    %v435 = vunpack.c.l.b16 %v147
    %v436 = vunpack.c.l.b16 %v148
    %v437 = vunpack.c.l.b16 %v149
    %v438 = vunpack.c.l.b16 %v150
    %v439 = vunpack.c.l.b16 %v151
    %v440 = vunpack.c.l.b16 %v152
    %v441 = vunpack.c.l.b16 %v153
    %v442 = vunpack.c.l.b16 %v154
    %v443 = vunpack.c.l.b16 %v155
    %v444 = vunpack.c.l.b16 %v156
    %v445 = vunpack.c.l.b16 %v157
    %v446 = vunpack.c.l.b16 %v158
    %v447 = vunpack.c.l.b16 %v159
    %v448 = vunpack.c.l.b16 %v160
    %v449 = vunpack.c.l.b16 %v161
    %v450 = vunpack.c.l.b16 %v162
    %v451 = vunpack.c.l.b16 %v163
    %v452 = vunpack.c.l.b16 %v164
    %v453 = vunpack.c.l.b16 %v165
    %v454 = vunpack.c.l.b16 %v166
    %v455 = vunpack.c.l.b16 %v167
    %v456 = vunpack.c.l.b16 %v168
    %v457 = vunpack.c.l.b16 %v169
    %v458 = vunpack.c.l.b16 %v170
    %v459 = vunpack.c.l.b16 %v171
    %v460 = vunpack.c.l.b16 %v172
    %v461 = vunpack.c.l.b16 %v173
    %v462 = vunpack.c.l.b16 %v174
    %v463 = vunpack.c.l.b16 %v175
    %v464 = vunpack.c.l.b16 %v176
    %v465 = vunpack.c.l.b16 %v177
    %v466 = vunpack.c.l.b16 %v178
    %v467 = vunpack.c.l.b16 %v179
    %v468 = vunpack.c.l.b16 %v180
    %v469 = vunpack.c.l.b16 %v181
    %v470 = vunpack.c.l.b16 %v182
    %v471 = vunpack.c.l.b16 %v183
    %v472 = vunpack.c.l.b16 %v184
    %v473 = vunpack.c.l.b16 %v185
    %v474 = vunpack.c.l.b16 %v186
    %v475 = vunpack.c.l.b16 %v187
    %v476 = vunpack.c.l.b16 %v188
    %v477 = vunpack.c.l.b16 %v189
    %v478 = vunpack.c.l.b16 %v190
    %v479 = vunpack.c.l.b16 %v191
    %v480 = vunpack.c.l.b16 %v192
    %v481 = vunpack.c.l.b16 %v193
    %v482 = vunpack.c.l.b16 %v194
    %v483 = vunpack.c.l.b16 %v195
    %v484 = vunpack.c.l.b16 %v196
    %v485 = vunpack.c.l.b16 %v197
    %v486 = vunpack.c.l.b16 %v198
    %v487 = vunpack.c.l.b16 %v199
    %v488 = vunpack.c.l.b16 %v200
    %v489 = vunpack.c.l.b16 %v201
    %v490 = vunpack.c.l.b16 %v202
    %v491 = vunpack.c.l.b16 %v203
    %v492 = vunpack.c.l.b16 %v204
    %v493 = vunpack.c.l.b16 %v205
    %v494 = vunpack.c.l.b16 %v206
    %v495 = vunpack.c.l.b16 %v207
    %v496 = vunpack.c.l.b16 %v208
    %v497 = vunpack.c.l.b16 %v209
    %v498 = vunpack.c.l.b16 %v210
    %v499 = vunpack.c.l.b16 %v211
    %v500 = vunpack.c.l.b16 %v212
    %v501 = vunpack.c.l.b16 %v213
    %v502 = vunpack.c.l.b16 %v214
    %v503 = vunpack.c.l.b16 %v215
    %v504 = vunpack.c.l.b16 %v216
    %v505 = vunpack.c.l.b16 %v217
    %v506 = vunpack.c.l.b16 %v218
    %v507 = vunpack.c.l.b16 %v219
    %v508 = vunpack.c.l.b16 %v220
    %v509 = vunpack.c.l.b16 %v221
    %v510 = vunpack.c.l.b16 %v222
    %v511 = vunpack.c.l.b16 %v223
    %v512 = vunpack.c.l.b16 %v224
    %v513 = vunpack.c.l.b16 %v225
    %v514 = vunpack.c.l.b16 %v226
    %v515 = vunpack.c.l.b16 %v227
    %v516 = vunpack.c.l.b16 %v228
    %v517 = vunpack.c.l.b16 %v229
    %v518 = vunpack.c.l.b16 %v230
    %v519 = vunpack.c.l.b16 %v231
    %v520 = vunpack.c.l.b16 %v232
    %v521 = vunpack.c.l.b16 %v233
    %v522 = vunpack.c.l.b16 %v234
    %v523 = vunpack.c.l.b16 %v235
    %v524 = vunpack.c.l.b16 %v236
    %v525 = vunpack.c.l.b16 %v237
    %v526 = vunpack.c.l.b16 %v238
    %v527 = vunpack.c.l.b16 %v239
    %v528 = vunpack.c.l.b16 %v240
    %v529 = vpack.c.b16 %v402, %v401
    %v530 = vpack.c.b16 %v404, %v403
    %v531 = vpack.c.b16 %v406, %v405
    %v532 = vpack.c.b16 %v408, %v407
    %v533 = vpack.c.b16 %v410, %v409
    %v534 = vpack.c.b16 %v412, %v411
    %v535 = vpack.c.b16 %v414, %v413
    %v536 = vpack.c.b16 %v416, %v415
    %v537 = vpack.c.b16 %v418, %v417
    %v538 = vpack.c.b16 %v420, %v419
    %v539 = vpack.c.b16 %v422, %v421
    %v540 = vpack.c.b16 %v424, %v423
    %v541 = vpack.c.b16 %v426, %v425
    %v542 = vpack.c.b16 %v428, %v427
    %v543 = vpack.c.b16 %v430, %v429
    %v544 = vpack.c.b16 %v432, %v431
    %v545 = vpack.c.b16 %v434, %v433
    %v546 = vpack.c.b16 %v436, %v435
    %v547 = vpack.c.b16 %v438, %v437
    %v548 = vpack.c.b16 %v440, %v439
    %v549 = vpack.c.b16 %v442, %v441
    %v550 = vpack.c.b16 %v444, %v443
    %v551 = vpack.c.b16 %v446, %v445
    %v552 = vpack.c.b16 %v448, %v447
    %v553 = vpack.c.b16 %v450, %v449
    %v554 = vpack.c.b16 %v452, %v451
    %v555 = vpack.c.b16 %v454, %v453
    %v556 = vpack.c.b16 %v456, %v455
    %v557 = vpack.c.b16 %v458, %v457
    %v558 = vpack.c.b16 %v460, %v459
    %v559 = vpack.c.b16 %v462, %v461
    %v560 = vpack.c.b16 %v464, %v463
    %v561 = vpack.c.b16 %v466, %v465
    %v562 = vpack.c.b16 %v468, %v467
    %v563 = vpack.c.b16 %v470, %v469
    %v564 = vpack.c.b16 %v472, %v471
    %v565 = vpack.c.b16 %v474, %v473
    %v566 = vpack.c.b16 %v476, %v475
    %v567 = vpack.c.b16 %v478, %v477
    %v568 = vpack.c.b16 %v480, %v479
    %v569 = vpack.c.b16 %v482, %v481
    %v570 = vpack.c.b16 %v484, %v483
    %v571 = vpack.c.b16 %v486, %v485
    %v572 = vpack.c.b16 %v488, %v487
    %v573 = vpack.c.b16 %v490, %v489
    %v574 = vpack.c.b16 %v492, %v491
    %v575 = vpack.c.b16 %v494, %v493
    %v576 = vpack.c.b16 %v496, %v495
    %v577 = vpack.c.b16 %v498, %v497
    %v578 = vpack.c.b16 %v500, %v499
    %v579 = vpack.c.b16 %v502, %v501
    %v580 = vpack.c.b16 %v504, %v503
    %v581 = vpack.c.b16 %v506, %v505
    %v582 = vpack.c.b16 %v508, %v507
    %v583 = vpack.c.b16 %v510, %v509
    %v584 = vpack.c.b16 %v512, %v511
    %v585 = vpack.c.b16 %v514, %v513
    %v586 = vpack.c.b16 %v516, %v515
    %v587 = vpack.c.b16 %v518, %v517
    %v588 = vpack.c.b16 %v520, %v519
    %v589 = vpack.c.b16 %v522, %v521
    %v590 = vpack.c.b16 %v524, %v523
    %v591 = vpack.c.b16 %v526, %v525
    %v592 = vpack.c.b16 %v528, %v527
    %657 = vmatpush.bf16.msra.mxu0 %v536
    %658 = vmatpush.bf16.msra.mxu0 %v535
    %659 = vmatpush.bf16.msra.mxu0 %v534
    %660 = vmatpush.bf16.msra.mxu0 %v533
    %661 = vmatpush.bf16.msra.mxu0 %v532
    %662 = vmatpush.bf16.msra.mxu0 %v531
    %663 = vmatpush.bf16.msra.mxu0 %v530
    %664 = vmatpush.bf16.msra.mxu0 %v529
    %665 = vmatmul.bf16.gmra.mxu0 %v257
    %v666 = vpop.f32.mrf.mxu0
    %v667 = vadd.f32 %v243, %v666
    %v668 = vpop.f32.mrf.mxu0
    %669 = vdwg.mxu0
    %670 = vmatpush.bf16.msra.mxu0 %v544
    %671 = vmatpush.bf16.msra.mxu0 %v543
    %672 = vmatpush.bf16.msra.mxu0 %v542
    %673 = vmatpush.bf16.msra.mxu0 %v541
    %674 = vmatpush.bf16.msra.mxu0 %v540
    %675 = vmatpush.bf16.msra.mxu0 %v539
    %676 = vmatpush.bf16.msra.mxu0 %v538
    %677 = vmatpush.bf16.msra.mxu0 %v537
    %678 = vmatmul.bf16.gmra.mxu0 %v258
    %v679 = vpop.f32.mrf.mxu0
    %v680 = vadd.f32 %v667, %v679
    %v681 = vpop.f32.mrf.mxu0
    %682 = vdwg.mxu0
    %683 = vmatpush.bf16.msra.mxu0 %v552
    %684 = vmatpush.bf16.msra.mxu0 %v551
    %685 = vmatpush.bf16.msra.mxu0 %v550
    %686 = vmatpush.bf16.msra.mxu0 %v549
    %687 = vmatpush.bf16.msra.mxu0 %v548
    %688 = vmatpush.bf16.msra.mxu0 %v547
    %689 = vmatpush.bf16.msra.mxu0 %v546
    %690 = vmatpush.bf16.msra.mxu0 %v545
    %691 = vmatmul.bf16.gmra.mxu0 %v259
    %v692 = vpop.f32.mrf.mxu0
    %v693 = vadd.f32 %v680, %v692
    %v694 = vpop.f32.mrf.mxu0
    %695 = vdwg.mxu0
    %696 = vmatpush.bf16.msra.mxu0 %v560
    %697 = vmatpush.bf16.msra.mxu0 %v559
    %698 = vmatpush.bf16.msra.mxu0 %v558
    %699 = vmatpush.bf16.msra.mxu0 %v557
    %700 = vmatpush.bf16.msra.mxu0 %v556
    %701 = vmatpush.bf16.msra.mxu0 %v555
    %702 = vmatpush.bf16.msra.mxu0 %v554
    %703 = vmatpush.bf16.msra.mxu0 %v553
    %704 = vmatmul.bf16.gmra.mxu0 %v260
    %v705 = vpop.f32.mrf.mxu0
    %v706 = vadd.f32 %v693, %v705
    %v707 = vpop.f32.mrf.mxu0
    %708 = vdwg.mxu0
    %709 = vmatpush.bf16.msra.mxu0 %v568
    %710 = vmatpush.bf16.msra.mxu0 %v567
    %711 = vmatpush.bf16.msra.mxu0 %v566
    %712 = vmatpush.bf16.msra.mxu0 %v565
    %713 = vmatpush.bf16.msra.mxu0 %v564
    %714 = vmatpush.bf16.msra.mxu0 %v563
    %715 = vmatpush.bf16.msra.mxu0 %v562
    %716 = vmatpush.bf16.msra.mxu0 %v561
    %717 = vmatmul.bf16.gmra.mxu0 %v261
    %v718 = vpop.f32.mrf.mxu0
    %v719 = vadd.f32 %v706, %v718
    %v720 = vpop.f32.mrf.mxu0
    %721 = vdwg.mxu0
    %722 = vmatpush.bf16.msra.mxu0 %v576
    %723 = vmatpush.bf16.msra.mxu0 %v575
    %724 = vmatpush.bf16.msra.mxu0 %v574
    %725 = vmatpush.bf16.msra.mxu0 %v573
    %726 = vmatpush.bf16.msra.mxu0 %v572
    %727 = vmatpush.bf16.msra.mxu0 %v571
    %728 = vmatpush.bf16.msra.mxu0 %v570
    %729 = vmatpush.bf16.msra.mxu0 %v569
    %730 = vmatmul.bf16.gmra.mxu0 %v262
    %v731 = vpop.f32.mrf.mxu0
    %v732 = vadd.f32 %v719, %v731
    %v733 = vpop.f32.mrf.mxu0
    %734 = vdwg.mxu0
    %735 = vmatpush.bf16.msra.mxu0 %v584
    %736 = vmatpush.bf16.msra.mxu0 %v583
    %737 = vmatpush.bf16.msra.mxu0 %v582
    %738 = vmatpush.bf16.msra.mxu0 %v581
    %739 = vmatpush.bf16.msra.mxu0 %v580
    %740 = vmatpush.bf16.msra.mxu0 %v579
    %741 = vmatpush.bf16.msra.mxu0 %v578
    %742 = vmatpush.bf16.msra.mxu0 %v577
    %743 = vmatmul.bf16.gmra.mxu0 %v263
    %v744 = vpop.f32.mrf.mxu0
    %v745 = vadd.f32 %v732, %v744
    %v746 = vpop.f32.mrf.mxu0
    %747 = vdwg.mxu0
    %748 = vmatpush.bf16.msra.mxu0 %v592
    %749 = vmatpush.bf16.msra.mxu0 %v591
    %750 = vmatpush.bf16.msra.mxu0 %v590
    %751 = vmatpush.bf16.msra.mxu0 %v589
    %752 = vmatpush.bf16.msra.mxu0 %v588
    %753 = vmatpush.bf16.msra.mxu0 %v587
    %754 = vmatpush.bf16.msra.mxu0 %v586
    %755 = vmatpush.bf16.msra.mxu0 %v585
    %756 = vmatmul.bf16.gmra.mxu0 %v264
    %v757 = vpop.f32.mrf.mxu0
    %v758 = vadd.f32 %v745, %v757
    %v759 = vpop.f32.mrf.mxu0
    %760 = vdwg.mxu0
    %v761 = vmax.f32 %v758, 0.0
    %v762 = vpack.c.bf16 %v761, %v761
    %v763 = vld [vmem:[#allocation7] sm:$0xf]
    %v764 = vld [vmem:[#allocation7 + $0x4] sm:$0xf]
    %v765 = vld [vmem:[#allocation7 + $0x8] sm:$0xf]
    %v766 = vld [vmem:[#allocation7 + $0xc] sm:$0xf]
    %v767 = vld [vmem:[#allocation7 + $0x10] sm:$0xf]
    %v768 = vld [vmem:[#allocation7 + $0x14] sm:$0xf]
    %v769 = vld [vmem:[#allocation7 + $0x18] sm:$0xf]
    %v770 = vld [vmem:[#allocation7 + $0x1c] sm:$0xf]
    %v771 = vld [vmem:[#allocation7 + $0x20] sm:$0xf]
    %v772 = vld [vmem:[#allocation7 + $0x24] sm:$0xf]
    %v773 = vld [vmem:[#allocation7 + $0x28] sm:$0xf]
    %v774 = vld [vmem:[#allocation7 + $0x2c] sm:$0xf]
    %v775 = vld [vmem:[#allocation7 + $0x30] sm:$0xf]
    %v776 = vld [vmem:[#allocation7 + $0x34] sm:$0xf]
    %v777 = vld [vmem:[#allocation7 + $0x38] sm:$0xf]
    %v778 = vld [vmem:[#allocation7 + $0x3c] sm:$0xf]
    %v779 = vld [vmem:[%s4] sm:$0x1]
    %v781 = vperm.slane %v779, 0
    %v799 = vunpack.c.l.b16 %v763
    %v800 = vunpack.c.l.b16 %v764
    %v801 = vunpack.c.l.b16 %v765
    %v802 = vunpack.c.l.b16 %v766
    %v803 = vunpack.c.l.b16 %v767
    %v804 = vunpack.c.l.b16 %v768
    %v805 = vunpack.c.l.b16 %v769
    %v806 = vunpack.c.l.b16 %v770
    %v807 = vunpack.c.l.b16 %v771
    %v808 = vunpack.c.l.b16 %v772
    %v809 = vunpack.c.l.b16 %v773
    %v810 = vunpack.c.l.b16 %v774
    %v811 = vunpack.c.l.b16 %v775
    %v812 = vunpack.c.l.b16 %v776
    %v813 = vunpack.c.l.b16 %v777
    %v814 = vunpack.c.l.b16 %v778
    %v815 = vpack.c.b16 %v800, %v799
    %v816 = vpack.c.b16 %v802, %v801
    %v817 = vpack.c.b16 %v804, %v803
    %v818 = vpack.c.b16 %v806, %v805
    %v819 = vpack.c.b16 %v808, %v807
    %v820 = vpack.c.b16 %v810, %v809
    %v821 = vpack.c.b16 %v812, %v811
    %v822 = vpack.c.b16 %v814, %v813
    %831 = vmatpush.bf16.msra.mxu0 %v822
    %832 = vmatpush.bf16.msra.mxu0 %v821
    %833 = vmatpush.bf16.msra.mxu0 %v820
    %834 = vmatpush.bf16.msra.mxu0 %v819
    %835 = vmatpush.bf16.msra.mxu0 %v818
    %836 = vmatpush.bf16.msra.mxu0 %v817
    %837 = vmatpush.bf16.msra.mxu0 %v816
    %838 = vmatpush.bf16.msra.mxu0 %v815
    %839 = vmatmul.bf16.gmra.mxu0 %v762
    %v840 = vpop.f32.mrf.mxu0
    %v841 = vadd.f32 %v781, %v840
    %v842 = vpop.f32.mrf.mxu0
    %843 = vdwg.mxu0
    %v844 = vmax.f32 %v841, 0.0
    %v845 = vpack.c.bf16 %v844, %v844
    %v846 = vld [vmem:[#allocation8] sm:$0xf]
    %v847 = vld [vmem:[#allocation8 + $0x4] sm:$0xf]
    %v848 = vld [vmem:[#allocation8 + $0x8] sm:$0xf]
    %v849 = vld [vmem:[#allocation8 + $0xc] sm:$0xf]
    %v850 = vld [vmem:[#allocation8 + $0x10] sm:$0xf]
    %v851 = vld [vmem:[#allocation8 + $0x14] sm:$0xf]
    %v852 = vld [vmem:[#allocation8 + $0x18] sm:$0xf]
    %v853 = vld [vmem:[#allocation8 + $0x1c] sm:$0xf]
    %v854 = vld [vmem:[#allocation8 + $0x20] sm:$0xf]
    %v855 = vld [vmem:[#allocation8 + $0x24] sm:$0xf]
    %v856 = vld [vmem:[#allocation8 + $0x28] sm:$0xf]
    %v857 = vld [vmem:[#allocation8 + $0x2c] sm:$0xf]
    %v858 = vld [vmem:[#allocation8 + $0x30] sm:$0xf]
    %v859 = vld [vmem:[#allocation8 + $0x34] sm:$0xf]
    %v860 = vld [vmem:[#allocation8 + $0x38] sm:$0xf]
    %v861 = vld [vmem:[#allocation8 + $0x3c] sm:$0xf]
    %v862 = vld [vmem:[%s6] sm:$0x1]
    %v864 = vperm.slane %v862, 0
    %v882 = vunpack.c.l.b16 %v846
    %v883 = vunpack.c.l.b16 %v847
    %v884 = vunpack.c.l.b16 %v848
    %v885 = vunpack.c.l.b16 %v849
    %v886 = vunpack.c.l.b16 %v850
    %v887 = vunpack.c.l.b16 %v851
    %v888 = vunpack.c.l.b16 %v852
    %v889 = vunpack.c.l.b16 %v853
    %v890 = vunpack.c.l.b16 %v854
    %v891 = vunpack.c.l.b16 %v855
    %v892 = vunpack.c.l.b16 %v856
    %v893 = vunpack.c.l.b16 %v857
    %v894 = vunpack.c.l.b16 %v858
    %v895 = vunpack.c.l.b16 %v859
    %v896 = vunpack.c.l.b16 %v860
    %v897 = vunpack.c.l.b16 %v861
    %v898 = vpack.c.b16 %v883, %v882
    %v899 = vpack.c.b16 %v885, %v884
    %v900 = vpack.c.b16 %v887, %v886
    %v901 = vpack.c.b16 %v889, %v888
    %v902 = vpack.c.b16 %v891, %v890
    %v903 = vpack.c.b16 %v893, %v892
    %v904 = vpack.c.b16 %v895, %v894
    %v905 = vpack.c.b16 %v897, %v896
    %914 = vmatpush.bf16.msra.mxu0 %v905
    %915 = vmatpush.bf16.msra.mxu0 %v904
    %916 = vmatpush.bf16.msra.mxu0 %v903
    %917 = vmatpush.bf16.msra.mxu0 %v902
    %918 = vmatpush.bf16.msra.mxu0 %v901
    %919 = vmatpush.bf16.msra.mxu0 %v900
    %920 = vmatpush.bf16.msra.mxu0 %v899
    %921 = vmatpush.bf16.msra.mxu0 %v898
    %922 = vmatmul.bf16.gmra.mxu0 %v845
    %v923 = vpop.f32.mrf.mxu0
    %v924 = vadd.f32 %v864, %v923
    %v925 = vpop.f32.mrf.mxu0
    %926 = vdwg.mxu0
    %v927 = vmax.f32 %v924, 0.0
    %v928 = vpack.c.bf16 %v927, %v927
    %v929 = vld [vmem:[#allocation10] sm:$0xf]
    %v930 = vld [vmem:[#allocation10 + $0x4] sm:$0xf]
    %v931 = vld [vmem:[#allocation10 + $0x8] sm:$0xf]
    %v932 = vld [vmem:[#allocation10 + $0xc] sm:$0xf]
    %v933 = vld [vmem:[#allocation10 + $0x10] sm:$0xf]
    %v934 = vld [vmem:[#allocation10 + $0x14] sm:$0xf]
    %v935 = vld [vmem:[#allocation10 + $0x18] sm:$0xf]
    %v936 = vld [vmem:[#allocation10 + $0x1c] sm:$0xf]
    %v937 = vld [vmem:[#allocation10 + $0x20] sm:$0xf]
    %v938 = vld [vmem:[#allocation10 + $0x24] sm:$0xf]
    %v939 = vld [vmem:[#allocation10 + $0x28] sm:$0xf]
    %v940 = vld [vmem:[#allocation10 + $0x2c] sm:$0xf]
    %v941 = vld [vmem:[#allocation10 + $0x30] sm:$0xf]
    %v942 = vld [vmem:[#allocation10 + $0x34] sm:$0xf]
    %v943 = vld [vmem:[#allocation10 + $0x38] sm:$0xf]
    %v944 = vld [vmem:[#allocation10 + $0x3c] sm:$0xf]
    %v945 = vld [vmem:[%s8] sm:$0x1]
    %v947 = vperm.slane %v945, 0
    %v965 = vunpack.c.l.b16 %v929
    %v966 = vunpack.c.l.b16 %v930
    %v967 = vunpack.c.l.b16 %v931
    %v968 = vunpack.c.l.b16 %v932
    %v969 = vunpack.c.l.b16 %v933
    %v970 = vunpack.c.l.b16 %v934
    %v971 = vunpack.c.l.b16 %v935
    %v972 = vunpack.c.l.b16 %v936
    %v973 = vunpack.c.l.b16 %v937
    %v974 = vunpack.c.l.b16 %v938
    %v975 = vunpack.c.l.b16 %v939
    %v976 = vunpack.c.l.b16 %v940
    %v977 = vunpack.c.l.b16 %v941
    %v978 = vunpack.c.l.b16 %v942
    %v979 = vunpack.c.l.b16 %v943
    %v980 = vunpack.c.l.b16 %v944
    %v981 = vpack.c.b16 %v966, %v965
    %v982 = vpack.c.b16 %v968, %v967
    %v983 = vpack.c.b16 %v970, %v969
    %v984 = vpack.c.b16 %v972, %v971
    %v985 = vpack.c.b16 %v974, %v973
    %v986 = vpack.c.b16 %v976, %v975
    %v987 = vpack.c.b16 %v978, %v977
    %v988 = vpack.c.b16 %v980, %v979
    %997 = vmatpush.bf16.msra.mxu0 %v988
    %998 = vmatpush.bf16.msra.mxu0 %v987
    %999 = vmatpush.bf16.msra.mxu0 %v986
    %1000 = vmatpush.bf16.msra.mxu0 %v985
    %1001 = vmatpush.bf16.msra.mxu0 %v984
    %1002 = vmatpush.bf16.msra.mxu0 %v983
    %1003 = vmatpush.bf16.msra.mxu0 %v982
    %1004 = vmatpush.bf16.msra.mxu0 %v981
    %1005 = vmatmul.bf16.gmra.mxu0 %v928
    %v1006 = vpop.f32.mrf.mxu0
    %v1007 = vadd.f32 %v947, %v1006
    %v1008 = vpop.f32.mrf.mxu0
    %1009 = vdwg.mxu0
    %v1010 = vxor.u32 %v1007, 2147483648
    %v1011 = vmul.f32 %v1010, 1.442695
    %v1012 = vpow.pop %v1011
    %v1013 = vadd.f32 %v1012, 1.0
    %v1014 = vrcp.pop %v1013
    %v1015 = vmul.f32 %v1013, %v1014
    %v1016 = vsub.f32 1.0, %v1015
    %v1017 = vmul.f32 %v1014, %v1016
    %v1018 = vadd.f32 %v1014, %v1017
    %vm1019 = vweird.f32 %v1013
    %vm1020 = vweird.f32 %v1014
    %vm1021 = vmor %vm1019, %vm1020
    %v1022 = vsel %vm1021, %v1014, %v1018
    %v1023 = vand.u32 2147483647, %v1013
    %vm1024 = vcmp.eq.f32.partialorder %v1023, 8.507059e+37
    %v1025 = vand.u32 %v1013, 2147483648
    %v1026 = vor.u32 1.1754944e-38, %v1025
    %v1027 = vsel %vm1024, %v1026, %v1022
    %v1028 = vmul.f32 1.0, %v1027
    %1029 = vst [vmem:[#allocation11] sm:$0xff] %v1028
    // Predicated region
    $region58: #{tpu_custom_call.1} parent=1 // pred_check
      _
    $region59: #{tpu_custom_call.1} parent=1 // pred_check_branch
      %1031 = sbr.rel (0) target = $region61
    $region60: #{tpu_custom_call.1} parent=1 // pred_region
      %1033 = vsyncadd [#allocation4], 0
      %s1035 = sshll.u32 [#allocation11], 4
      %s1036 = int_to_ptr.vmem [resolvable:$true] %s1035
      %s1037 = sshll.u32 %s9, 4
      %s1038 = int_to_ptr.hbm [resolvable:$true] %s1037
      %1040 = dma.vmem_to_hbm [thread:$0]  %s1036, 128, %s1038, [#allocation4]
    $region61: #{tpu_custom_call.1} parent=1 // pred_fallthru
      _
    // Predicated region
    $region62: #{tpu_custom_call.1} parent=1 // pred_check
      _
    $region63: #{tpu_custom_call.1} parent=1 // pred_check_branch
      %1042 = sbr.rel (0) target = $region65
    $region64: #{tpu_custom_call.1} parent=1 // pred_region
      %1044 = dma.done [#allocation4], 128
    $region65: #{tpu_custom_call.1} parent=1 // pred_fallthru
      _
    %1045 = vsyncpa [#allocation3], 1
    %1046 = vsyncpa [#allocation6], 1
    %1047 = vsyncpa [#allocation9], 1
    %1048 = vsyncpa [#allocation4], 1

</llo_original>
